<compile_context>
chip_gen: v7x
topology: tpu7x:2x2x1
jax: 0.10.0
libtpu: 0.0.40
codegen_flags: <defaults>
</compile_context>

<pallas_src>
import jax
import jax.numpy as jnp
from jax import lax
from jax.experimental import pallas as pl
from jax.experimental.pallas import tpu as pltpu

NEG_INF = -1e30   # bias for padded cluster logits -> exp underflows to exactly 0


# --------------------------------------------------------------------------
# Small helpers.
# --------------------------------------------------------------------------
def _round_up(x, m):
    return ((x + m - 1) // m) * m


def _vmem_capacity_bytes():
    """Physical VMEM per core (falls back to a conservative v7x-sized value)."""
    try:
        return int(pltpu.get_tpu_info().vmem_capacity_bytes)
    except Exception:
        return 64 * 1024 * 1024


def _largest_divisor(n, cap, step):
    """Largest multiple of `step` dividing n that is <= cap (None if none)."""
    best, t, cap = None, step, min(cap, n)
    while t <= cap:
        if n % t == 0:
            best = t
        t += step
    return best


def _resident_spec(block_shape, index_map):
    """BlockSpec for a grid-invariant operand; single-buffered when supported."""
    try:
        return pl.BlockSpec(block_shape, index_map, pipeline_mode=pl.Buffered(1))
    except (AttributeError, TypeError):
        return pl.BlockSpec(block_shape, index_map)


# --------------------------------------------------------------------------
# Pass 1: assignment MLP (single orthogonal Linear) + softmax, row-tiled.
# --------------------------------------------------------------------------
def _assign_kernel(x_ref, w_ref, b_ref, s_ref):
    logits = jnp.dot(x_ref[...], w_ref[...],
                     preferred_element_type=jnp.float32) + b_ref[...]
    logits = logits - jnp.max(logits, axis=1, keepdims=True)
    e = jnp.exp(logits)                                    # padded lanes -> 0
    s_ref[...] = e / jnp.sum(e, axis=1, keepdims=True)


# --------------------------------------------------------------------------
# Pass 2: modularity statistics + pooled features, streaming A row-tiles once.
# Grid = (num_parallel, tiles_per_part); axis 0 is "parallel" (v7x megacore),
# axis 1 is the "arbitrary" reduction over row tiles.
# --------------------------------------------------------------------------
def _modularity_kernel(s_bf16_ref, s_ref, adj_ref, x_ref,
                       pooled_ref, stats_ref,
                       cs_acc, ds_acc, tr_acc):
    i = pl.program_id(1)

    @pl.when(i == 0)
    def _init():
        pooled_ref[...] = jnp.zeros_like(pooled_ref)
        cs_acc[...] = jnp.zeros_like(cs_acc)
        ds_acc[...] = jnp.zeros_like(ds_acc)
        tr_acc[...] = jnp.zeros_like(tr_acc)

    s_tile = s_ref[...]                                    # [TN, K_pad] f32 stream
    adj_bf16 = adj_ref[...].astype(jnp.bfloat16)           # int8 -> bf16 (VPU)

    # The only pass over the adjacency stream: native bf16 x bf16 -> f32 MXU op.
    a_s = jnp.dot(adj_bf16, s_bf16_ref[...],
                  preferred_element_type=jnp.float32)      # [TN, K_pad]

    cs_acc[...] += jnp.sum(s_tile, axis=0, keepdims=True)          # colsum(S)
    ds_acc[...] += jnp.sum(a_s, axis=0, keepdims=True)             # colsum(A@S)
    tr_acc[...] += jnp.sum(a_s * s_tile, axis=0, keepdims=True)    # trace cols

    # pooled accumulator: S_tile^T @ X_tile, contracting dim 0 of both operands
    # (no explicit transpose / relayout before the MXU); lane-dense (F padded).
    pooled_ref[...] += lax.dot_general(
        s_tile, x_ref[...], (((0,), (0,)), ((), ())),
        preferred_element_type=jnp.float32)

    @pl.when(i == pl.num_programs(1) - 1)
    def _finalize():
        # Pack the three [1, K_pad] accumulators into rows 0..2 of the (8, K_pad)
        # stats output with a single whole-tile store (no masked sublane stores).
        rows = lax.broadcasted_iota(jnp.int32, stats_ref.shape, 0)
        stats = jnp.where(rows == 0, cs_acc[...], 0.0)
        stats = jnp.where(rows == 1, ds_acc[...], stats)
        stats = jnp.where(rows == 2, tr_acc[...], stats)
        stats_ref[...] = stats


# --------------------------------------------------------------------------
# Wrapper.
# --------------------------------------------------------------------------
def dmon_forward(features, adjacency, w, b, *, k,
                 collapse_regularization=0.1, tile_n=None, num_parallel=2):
    """DMoN forward. Returns (assignments [N,K], pooled [K,F], spectral, collapse).

    NOTE: the adjacency is streamed as int8, which is exact for the 0/1 edge
    weights DMoN uses; weighted graphs would need a bf16/f32 stream instead.
    """
    n, f = features.shape
    assert adjacency.shape == (n, n)
    f32 = jnp.float32

    k_pad = _round_up(k, 128)
    f_pad = _round_up(f, 128)

    vmem_cap = _vmem_capacity_bytes()
    vmem_limit = max(32 * 2**20, min(int(0.85 * vmem_cap), 100 * 2**20))

    # ---- generation-aware tiling for pass 2 --------------------------------
    if num_parallel < 1 or n % num_parallel != 0 or (n // num_parallel) % 32 != 0:
        num_parallel = 1
    part = n // num_parallel
    if tile_n is None:
        resident = n * k_pad * 2 + k_pad * f_pad * 4 + 11 * k_pad * 4
        per_row = 2 * (n + (k_pad + f_pad) * 4)     # double-buffered streams
        row_cap = max(32, max(vmem_cap // 2 - resident, 0) // per_row)
        tile_n = _largest_divisor(part, min(row_cap, 1024), 32)
        if tile_n is None:                          # tiny graphs: no tiling
            num_parallel, part, tile_n = 1, n, n
    assert part % tile_n == 0, "tile_n must divide n // num_parallel"
    assert tile_n % 32 == 0 or tile_n == n, "int8 tiles need 32-row alignment"
    tiles_per_part = part // tile_n

    # Pass-1 tiling is decoupled (footprint is tiny -> use fat row tiles).
    tile_n1 = _largest_divisor(n, 1024, 8) or n

    # ---- host-side padding (one-time) ---------------------------------------
    features_f32 = jnp.asarray(features, f32)
    features_pad = jnp.zeros((n, f_pad), f32).at[:, :f].set(features_f32)
    w_pad = jnp.zeros((f_pad, k_pad), f32).at[:f, :k].set(jnp.asarray(w, f32))
    b_pad = jnp.full((1, k_pad), NEG_INF, f32).at[0, :k].set(
        jnp.asarray(b, f32).reshape(-1))
    # int8 adjacency stream (exact for 0/1 edges, quarters the dominant HBM read).
    # TODO(synk): on v7x a float8_e4m3 stream would skip the int8->bf16 cast.
    adj_i8 = jnp.asarray(adjacency).astype(jnp.int8)

    # ---- pass 1: soft assignments, lane-dense [N, K_pad] --------------------
    assignments_pad = pl.pallas_call(
        _assign_kernel,
        out_shape=jax.ShapeDtypeStruct((n, k_pad), f32),
        grid=(n // tile_n1,),
        in_specs=[
            pl.BlockSpec((tile_n1, f_pad), lambda i: (i, 0)),   # features stream
            _resident_spec((f_pad, k_pad), lambda i: (0, 0)),   # weight, resident
            _resident_spec((1, k_pad), lambda i: (0, 0)),       # bias, resident
        ],
        out_specs=pl.BlockSpec((tile_n1, k_pad), lambda i: (i, 0)),
        compiler_params=pltpu.CompilerParams(
            dimension_semantics=("parallel",)),
    )(features_pad, w_pad, b_pad)

    # ---- pass 2: stream adjacency rows once; accumulate pooled / stats ------
    s_bf16 = assignments_pad.astype(jnp.bfloat16)   # MXU operand for A @ S

    def _stream_idx(p, i):
        return (p * tiles_per_part + i, 0)

    pooled_out, stats_out = pl.pallas_call(
        _modularity_kernel,
        out_shape=(
            jax.ShapeDtypeStruct((num_parallel * k_pad, f_pad), f32),  # S^T X
            jax.ShapeDtypeStruct((num_parallel * 8, k_pad), f32),      # cs/ds/tr
        ),
        grid=(num_parallel, tiles_per_part),
        in_specs=[
            _resident_spec((n, k_pad), lambda p, i: (0, 0)),    # S bf16, resident
            pl.BlockSpec((tile_n, k_pad), _stream_idx),         # S f32 row tiles
            pl.BlockSpec((tile_n, n), _stream_idx),             # adjacency stream
            pl.BlockSpec((tile_n, f_pad), _stream_idx),         # features stream
        ],
        out_specs=(
            pl.BlockSpec((k_pad, f_pad), lambda p, i: (p, 0)),  # per-core slab
            pl.BlockSpec((8, k_pad), lambda p, i: (p, 0)),
        ),
        scratch_shapes=[
            pltpu.VMEM((1, k_pad), f32),    # cluster_sizes accumulator
            pltpu.VMEM((1, k_pad), f32),    # d_s accumulator
            pltpu.VMEM((1, k_pad), f32),    # trace-column accumulator
        ],
        compiler_params=pltpu.CompilerParams(
            dimension_semantics=("parallel", "arbitrary"),
            vmem_limit_bytes=vmem_limit),
    )(s_bf16, assignments_pad, adj_i8, features_pad)

    # ---- tiny JAX epilogue: combine per-core partials, losses, scale + SELU --
    pooled_raw = pooled_out.reshape(num_parallel, k_pad, f_pad).sum(axis=0)
    stats = stats_out.reshape(num_parallel, 8, k_pad).sum(axis=0)
    cs, ds, tr = stats[0], stats[1], stats[2]        # [K_pad] each (padded: 0)

    num_edges = jnp.sum(ds)                          # == sum(degrees) == sum(A)
    inv_2e = 1.0 / (2.0 * num_edges)
    # spectral = -(trace(S^T A^T S) - trace((S^T d)(d^T S)) / (2E)) / (2E)
    spectral = -(jnp.sum(tr) - jnp.sum(ds * ds) * inv_2e) * inv_2e
    collapse = collapse_regularization * (
        jnp.sqrt(jnp.sum(cs * cs)) / jnp.float32(n) * jnp.sqrt(jnp.float32(k))
        - 1.0)

    inv_cs = 1.0 / jnp.where(cs > 0.0, cs, 1.0)      # padded clusters stay 0
    pooled = jax.nn.selu(pooled_raw * inv_cs[:, None])

    # TODO(synk): renyi_loss() is an external, undefined function in the
    # reference module and cannot be reproduced; dropout / hidden MLP layers /
    # do_unpool are disabled by default in the module and are not emitted.
    return assignments_pad[:, :k], pooled[:k, :f], spectral, collapse


# --------------------------------------------------------------------------
# Pure-JAX reference mirroring the PyTorch forward (f32 throughout).
# --------------------------------------------------------------------------
def dmon_reference(features, adjacency, w, b, *, k, collapse_regularization=0.1):
    logits = features @ w + b
    assignments = jax.nn.softmax(logits, axis=1)
    cluster_sizes = jnp.sum(assignments, axis=0)
    assignments_pooling = assignments / cluster_sizes
    degrees = jnp.sum(adjacency, axis=0).reshape(-1, 1)
    num_edges = jnp.sum(degrees)
    graph_pooled = (adjacency @ assignments).T @ assignments
    nl = assignments.T @ degrees
    nr = degrees.T @ assignments
    normalizer = (nl @ nr) / (2.0 * num_edges)
    spectral = -jnp.trace(graph_pooled - normalizer) / (2.0 * num_edges)
    collapse = collapse_regularization * (
        jnp.linalg.norm(cluster_sizes) / features.shape[0]
        * jnp.sqrt(jnp.float32(k)) - 1.0)
    pooled = jax.nn.selu(assignments_pooling.T @ features)
    return assignments, pooled, spectral, collapse


if __name__ == "__main__":
    N, F, K = 256, 32, 8

    key = jax.random.PRNGKey(0)
    k_feat, k_adj, k_w = jax.random.split(key, 3)

    features = jax.random.normal(k_feat, (N, F), dtype=jnp.float32)

    # Symmetric, non-negative 0/1 dense adjacency (stand-in for torch sparse).
    a = (jax.random.uniform(k_adj, (N, N)) < 0.1).astype(jnp.float32)
    adjacency = jnp.maximum(a, a.T)

    # Orthogonal init for the final Linear [K, F] -> stored as [F, K], zero bias.
    g = jax.random.normal(k_w, (F, K), dtype=jnp.float32)
    q, _ = jnp.linalg.qr(g)
    w = q.astype(jnp.float32)
    b = jnp.zeros((K,), dtype=jnp.float32)

    outs = dmon_forward(features, adjacency, w, b, k=K,
                        collapse_regularization=0.1, tile_n=64, num_parallel=2)
    outs = jax.block_until_ready(outs)
    assignments, pooled, spectral, collapse = outs

    # Sanity-check against the pure-JAX f32 reference (tolerances allow for the
    # bf16 MXU operand of A @ S and default-precision matmuls on both sides).
    ref = dmon_reference(features, adjacency, w, b, k=K,
                         collapse_regularization=0.1)
    assert assignments.shape == (N, K) and pooled.shape == (K, F)
    assert jnp.allclose(assignments, ref[0], atol=3e-3, rtol=3e-3), "assignments"
    assert jnp.allclose(pooled, ref[1], atol=5e-3, rtol=5e-3), "pooled"
    assert jnp.allclose(spectral, ref[2], atol=2e-3, rtol=2e-2), "spectral"
    assert jnp.allclose(collapse, ref[3], atol=2e-3, rtol=2e-2), "collapse"

    print("KERNEL_OK")
</pallas_src>

<mosaic_0001>
module attributes {stable_mosaic.version = 11 : i64} {
  func.func @_assign_kernel(%arg0: i32, %arg1: memref<256x128xf32, #tpu.memory_space<vmem>>, %arg2: memref<128x128xf32, #tpu.memory_space<vmem>>, %arg3: memref<1x128xf32, #tpu.memory_space<vmem>>, %arg4: memref<256x128xf32, #tpu.memory_space<vmem>>) attributes {dimension_semantics = [#tpu.dimension_semantics<parallel>], iteration_bounds = array<i64: 1>, scalar_prefetch = 0 : i64, scratch_operands = 0 : i64, tpu.core_type = #tpu.core_type<tc>, window_params = [{transform_indices = @transform_0, window_bounds = array<i64: 256, 128>}, {pipeline_mode = #tpu.pipeline_mode<synchronous>, transform_indices = @transform_1, window_bounds = array<i64: 128, 128>}, {pipeline_mode = #tpu.pipeline_mode<synchronous>, transform_indices = @transform_2, window_bounds = array<i64: 1, 128>}, {transform_indices = @transform_3, window_bounds = array<i64: 256, 128>}]} {
    %c0 = arith.constant 0 : index
    %c0_0 = arith.constant 0 : index
    %0 = vector.load %arg1[%c0, %c0_0] : memref<256x128xf32, #tpu.memory_space<vmem>>, vector<256x128xf32>
    %c0_1 = arith.constant 0 : index
    %c0_2 = arith.constant 0 : index
    %1 = vector.load %arg2[%c0_1, %c0_2] : memref<128x128xf32, #tpu.memory_space<vmem>>, vector<128x128xf32>
    %cst = arith.constant dense<0.000000e+00> : vector<256x128xf32>
    %2 = tpu.matmul %0, %1, %cst {dimension_numbers = #tpu.dot_dimension_numbers<[1], [0], [0], [1], [0, 0, 1, 1], [], []>} : vector<256x128xf32>, vector<128x128xf32>, vector<256x128xf32> -> vector<256x128xf32>
    %c0_3 = arith.constant 0 : index
    %c0_4 = arith.constant 0 : index
    %3 = vector.load %arg3[%c0_3, %c0_4] : memref<1x128xf32, #tpu.memory_space<vmem>>, vector<1x128xf32>
    %4 = vector.broadcast %3 : vector<1x128xf32> to vector<256x128xf32>
    %5 = arith.addf %2, %4 : vector<256x128xf32>
    %cst_5 = arith.constant dense<0xFF800000> : vector<256xf32>
    %6 = vector.multi_reduction <maximumf>, %5, %cst_5 [1] : vector<256x128xf32> to vector<256xf32>
    %7 = vector.shape_cast %6 : vector<256xf32> to vector<256x1xf32>
    %8 = vector.broadcast %7 : vector<256x1xf32> to vector<256x128xf32>
    %9 = arith.subf %5, %8 : vector<256x128xf32>
    %10 = math.exp %9 : vector<256x128xf32>
    %cst_6 = arith.constant dense<0.000000e+00> : vector<256xf32>
    %11 = vector.multi_reduction <add>, %10, %cst_6 [1] : vector<256x128xf32> to vector<256xf32>
    %12 = vector.shape_cast %11 : vector<256xf32> to vector<256x1xf32>
    %13 = vector.broadcast %12 : vector<256x1xf32> to vector<256x128xf32>
    %14 = arith.divf %10, %13 : vector<256x128xf32>
    %c0_7 = arith.constant 0 : index
    %c0_8 = arith.constant 0 : index
    %15 = vector.load %arg4[%c0_7, %c0_8] : memref<256x128xf32, #tpu.memory_space<vmem>>, vector<256x128xf32>
    tpu.vector_store %arg4[%c0_7, %c0_8], %14 {strides = array<i32>} : memref<256x128xf32, #tpu.memory_space<vmem>>, vector<256x128xf32>,
    return
  }
  func.func @transform_0(%arg0: i32) -> (i32, i32) {
    %c0_i32 = arith.constant 0 : i32
    %c0_i32_0 = arith.constant 0 : i32
    return %arg0, %c0_i32 : i32, i32
  }
  func.func @transform_1(%arg0: i32) -> (i32, i32) {
    %c0_i32 = arith.constant 0 : i32
    %c0_i32_0 = arith.constant 0 : i32
    %c0_i32_1 = arith.constant 0 : i32
    return %c0_i32, %c0_i32_0 : i32, i32
  }
  func.func @transform_2(%arg0: i32) -> (i32, i32) {
    %c0_i32 = arith.constant 0 : i32
    %c0_i32_0 = arith.constant 0 : i32
    %c0_i32_1 = arith.constant 0 : i32
    return %c0_i32, %c0_i32_0 : i32, i32
  }
  func.func @transform_3(%arg0: i32) -> (i32, i32) {
    %c0_i32 = arith.constant 0 : i32
    %c0_i32_0 = arith.constant 0 : i32
    return %arg0, %c0_i32 : i32, i32
  }
}

</mosaic_0001>

<llo_original>
// kernel: tpu_custom_call.1
$region0: #{tpu_custom_call.1}
  #allocation0 [shape = 'u32[]', space=smem, size = 0x4, offset = 0x4, fixed_abs, tag = 'smem constant byte address 0x4 - core index']
  #allocation1 [shape = 'u32[144,128]{1,0:T(1,128)}', space=vmem, size = 0x12000, scoped, tag = 'internal scratch']
  %s0 = inlined_call_operand.hbm [shape: f32[256,128], index: 0, kind: input, shape index: {}]
  %s1 = inlined_call_operand.hbm [shape: f32[128,128], index: 1, kind: input, shape index: {}]
  %s2 = inlined_call_operand.vmem [shape: f32[1,128], index: 2, kind: input, shape index: {}]
  %s3 = inlined_call_operand.hbm [shape: f32[256,128], index: 3, kind: output, shape index: {}]
  %s4 = sld [smem:[#allocation0]]
  $region30: #{tpu_custom_call.1} parent=0
    _
  %s6 = ssub.s32 1, %s4
  %s7 = scalar_select 0, %s6, %s4
  $region1: #{tpu_custom_call.1} parent=0
    #allocation2 [shape = 'u8[131072]{0}', space=vmem, size = 0x20000, scoped, tag = 'input window, operand 0, single buffered']
    #allocation3 [shape = 's32[1]{0}', space=sflag, size = 0x4, scoped, tag = 'scoped memory for tpu_custom_call.1']
    #allocation4 [shape = 's32[1]{0}', space=sflag, size = 0x4, scoped, tag = 'scoped memory for tpu_custom_call.1']
    #allocation5 [shape = 'u8[65536]{0}', space=vmem, size = 0x10000, scoped, tag = 'input window, operand 1, single buffered']
    #allocation6 [shape = 's32[1]{0}', space=sflag, size = 0x4, scoped, tag = 'scoped memory for tpu_custom_call.1']
    #allocation7 [shape = 'u8[131072]{0}', space=vmem, size = 0x20000, scoped, tag = 'output window, operand 0, single buffered']
    %8 = vsyncpa [#allocation3], 0
    %9 = vsyncpa [#allocation6], 0
    %10 = vsyncpa [#allocation4], 0
    // Predicated region
    $region2: #{tpu_custom_call.1} parent=1 // pred_check
      _
    $region3: #{tpu_custom_call.1} parent=1 // pred_check_branch
      %12 = sbr.rel (0) target = $region5
    $region4: #{tpu_custom_call.1} parent=1 // pred_region
      %s14 = ssub.s32 4096, 4096
      %15 = vsyncadd [#allocation3], %s14
      %s16 = sshll.u32 [#allocation2], 4
      %s17 = int_to_ptr.vmem [resolvable:$true] %s16
      %22 = dma.hbm_to_vmem [thread:$0]  %s0, 4096, %s17, [#allocation3], 128, 128, 8
    $region5: #{tpu_custom_call.1} parent=1 // pred_fallthru
      _
    // Predicated region
    $region6: #{tpu_custom_call.1} parent=1 // pred_check
      _
    $region7: #{tpu_custom_call.1} parent=1 // pred_check_branch
      %24 = sbr.rel (0) target = $region9
    $region8: #{tpu_custom_call.1} parent=1 // pred_region
      %s26 = ssub.s32 2048, 2048
      %27 = vsyncadd [#allocation6], %s26
      %s28 = sshll.u32 [#allocation5], 4
      %s29 = int_to_ptr.vmem [resolvable:$true] %s28
      %34 = dma.hbm_to_vmem [thread:$0]  %s1, 2048, %s29, [#allocation6], 128, 128, 8
    $region9: #{tpu_custom_call.1} parent=1 // pred_fallthru
      _
    // Predicated region
    $region10: #{tpu_custom_call.1} parent=1 // pred_check
      _
    $region11: #{tpu_custom_call.1} parent=1 // pred_check_branch
      %36 = sbr.rel (0) target = $region13
    $region12: #{tpu_custom_call.1} parent=1 // pred_region
      _
    $region13: #{tpu_custom_call.1} parent=1 // pred_fallthru
      _
    // Predicated region
    $region14: #{tpu_custom_call.1} parent=1 // pred_check
      _
    $region15: #{tpu_custom_call.1} parent=1 // pred_check_branch
      %38 = sbr.rel (0) target = $region17
    $region16: #{tpu_custom_call.1} parent=1 // pred_region
      %39 = dma.done [#allocation3], 4096
    $region17: #{tpu_custom_call.1} parent=1 // pred_fallthru
      _
    // Predicated region
    $region18: #{tpu_custom_call.1} parent=1 // pred_check
      _
    $region19: #{tpu_custom_call.1} parent=1 // pred_check_branch
      %41 = sbr.rel (0) target = $region21
    $region20: #{tpu_custom_call.1} parent=1 // pred_region
      %42 = dma.done [#allocation6], 2048
    $region21: #{tpu_custom_call.1} parent=1 // pred_fallthru
      _
    %v43 = vld [vmem:[#allocation2] sm:$0xff]
    %v44 = vld [vmem:[#allocation2 + $0x8] sm:$0xff]
    %v45 = vld [vmem:[#allocation2 + $0x10] sm:$0xff]
    %v46 = vld [vmem:[#allocation2 + $0x18] sm:$0xff]
    %v47 = vld [vmem:[#allocation2 + $0x20] sm:$0xff]
    %v48 = vld [vmem:[#allocation2 + $0x28] sm:$0xff]
    %v49 = vld [vmem:[#allocation2 + $0x30] sm:$0xff]
    %v50 = vld [vmem:[#allocation2 + $0x38] sm:$0xff]
    %v51 = vld [vmem:[#allocation2 + $0x40] sm:$0xff]
    %v52 = vld [vmem:[#allocation2 + $0x48] sm:$0xff]
    %v53 = vld [vmem:[#allocation2 + $0x50] sm:$0xff]
    %v54 = vld [vmem:[#allocation2 + $0x58] sm:$0xff]
    %v55 = vld [vmem:[#allocation2 + $0x60] sm:$0xff]
    %v56 = vld [vmem:[#allocation2 + $0x68] sm:$0xff]
    %v57 = vld [vmem:[#allocation2 + $0x70] sm:$0xff]
    %v58 = vld [vmem:[#allocation2 + $0x78] sm:$0xff]
    %v59 = vld [vmem:[#allocation2 + $0x80] sm:$0xff]
    %v60 = vld [vmem:[#allocation2 + $0x88] sm:$0xff]
    %v61 = vld [vmem:[#allocation2 + $0x90] sm:$0xff]
    %v62 = vld [vmem:[#allocation2 + $0x98] sm:$0xff]
    %v63 = vld [vmem:[#allocation2 + $0xa0] sm:$0xff]
    %v64 = vld [vmem:[#allocation2 + $0xa8] sm:$0xff]
    %v65 = vld [vmem:[#allocation2 + $0xb0] sm:$0xff]
    %v66 = vld [vmem:[#allocation2 + $0xb8] sm:$0xff]
    %v67 = vld [vmem:[#allocation2 + $0xc0] sm:$0xff]
    %v68 = vld [vmem:[#allocation2 + $0xc8] sm:$0xff]
    %v69 = vld [vmem:[#allocation2 + $0xd0] sm:$0xff]
    %v70 = vld [vmem:[#allocation2 + $0xd8] sm:$0xff]
    %v71 = vld [vmem:[#allocation2 + $0xe0] sm:$0xff]
    %v72 = vld [vmem:[#allocation2 + $0xe8] sm:$0xff]
    %v73 = vld [vmem:[#allocation2 + $0xf0] sm:$0xff]
    %v74 = vld [vmem:[#allocation2 + $0xf8] sm:$0xff]
    %v75 = vld [vmem:[#allocation5] sm:$0xff]
    %v76 = vld [vmem:[#allocation5 + $0x8] sm:$0xff]
    %v77 = vld [vmem:[#allocation5 + $0x10] sm:$0xff]
    %v78 = vld [vmem:[#allocation5 + $0x18] sm:$0xff]
    %v79 = vld [vmem:[#allocation5 + $0x20] sm:$0xff]
    %v80 = vld [vmem:[#allocation5 + $0x28] sm:$0xff]
    %v81 = vld [vmem:[#allocation5 + $0x30] sm:$0xff]
    %v82 = vld [vmem:[#allocation5 + $0x38] sm:$0xff]
    %v83 = vld [vmem:[#allocation5 + $0x40] sm:$0xff]
    %v84 = vld [vmem:[#allocation5 + $0x48] sm:$0xff]
    %v85 = vld [vmem:[#allocation5 + $0x50] sm:$0xff]
    %v86 = vld [vmem:[#allocation5 + $0x58] sm:$0xff]
    %v87 = vld [vmem:[#allocation5 + $0x60] sm:$0xff]
    %v88 = vld [vmem:[#allocation5 + $0x68] sm:$0xff]
    %v89 = vld [vmem:[#allocation5 + $0x70] sm:$0xff]
    %v90 = vld [vmem:[#allocation5 + $0x78] sm:$0xff]
    %v91 = vld [vmem:[%s2] sm:$0x1]
    %v93 = vlaneseq
    %v94 = vshrl.u32 %v93, 7
    %v95 = vsub.s32 0, %v94
    %v96 = vrot.slane %v91, %v95
    %98 = vmatprep.subr.mxu0 0.0
    %99 = vmatpush1.msra.mxu0 %v75
    %100 = vmatprep.subr.mxu0 0.0
    %101 = vmatpush1.msra.mxu0 %v76
    %102 = vmatprep.subr.mxu0 0.0
    %103 = vmatpush1.msra.mxu0 %v77
    %104 = vmatprep.subr.mxu0 0.0
    %105 = vmatpush1.msra.mxu0 %v78
    %106 = vmatprep.subr.mxu0 0.0
    %107 = vmatpush1.msra.mxu0 %v79
    %108 = vmatprep.subr.mxu0 0.0
    %109 = vmatpush1.msra.mxu0 %v80
    %110 = vmatprep.subr.mxu0 0.0
    %111 = vmatpush1.msra.mxu0 %v81
    %112 = vmatprep.subr.mxu0 0.0
    %113 = vmatpush1.msra.mxu0 %v82
    %114 = vmatprep.subr.mxu0 0.0
    %115 = vmatpush1.msra.mxu0 %v83
    %116 = vmatprep.subr.mxu0 0.0
    %117 = vmatpush1.msra.mxu0 %v84
    %118 = vmatprep.subr.mxu0 0.0
    %119 = vmatpush1.msra.mxu0 %v85
    %120 = vmatprep.subr.mxu0 0.0
    %121 = vmatpush1.msra.mxu0 %v86
    %122 = vmatprep.subr.mxu0 0.0
    %123 = vmatpush1.msra.mxu0 %v87
    %124 = vmatprep.subr.mxu0 0.0
    %125 = vmatpush1.msra.mxu0 %v88
    %126 = vmatprep.subr.mxu0 0.0
    %127 = vmatpush1.msra.mxu0 %v89
    %128 = vmatprep.subr.mxu0 0.0
    %129 = vmatpush1.msra.mxu0 %v90
    %130 = vmatprep.subr.mxu0 0.0
    %131 = vmatpush1.msra.mxu0 0.0
    %132 = vmatprep.subr.mxu0 0.0
    %133 = vmatpush1.msra.mxu0 0.0
    %134 = vmatprep.subr.mxu0 0.0
    %135 = vmatpush1.msra.mxu0 0.0
    %136 = vmatprep.subr.mxu0 0.0
    %137 = vmatpush1.msra.mxu0 0.0
    %138 = vmatprep.subr.mxu0 0.0
    %139 = vmatpush1.msra.mxu0 0.0
    %140 = vmatprep.subr.mxu0 0.0
    %141 = vmatpush1.msra.mxu0 0.0
    %142 = vmatprep.subr.mxu0 0.0
    %143 = vmatpush1.msra.mxu0 0.0
    %144 = vmatprep.subr.mxu0 0.0
    %145 = vmatpush1.msra.mxu0 0.0
    %146 = vmatprep.subr.mxu0 0.0
    %147 = vmatpush1.msra.mxu0 0.0
    %148 = vmatprep.subr.mxu0 0.0
    %149 = vmatpush1.msra.mxu0 0.0
    %150 = vmatprep.subr.mxu0 0.0
    %151 = vmatpush1.msra.mxu0 0.0
    %152 = vmatprep.subr.mxu0 0.0
    %153 = vmatpush1.msra.mxu0 0.0
    %154 = vmatprep.subr.mxu0 0.0
    %155 = vmatpush1.msra.mxu0 0.0
    %156 = vmatprep.subr.mxu0 0.0
    %157 = vmatpush1.msra.mxu0 0.0
    %158 = vmatprep.subr.mxu0 0.0
    %159 = vmatpush1.msra.mxu0 0.0
    %160 = vmatprep.subr.mxu0 0.0
    %161 = vmatpush1.msra.mxu0 0.0
    %162 = vmatprep.mubr.f32.mxu0 0.0
    %163 = vmatmul.mubr.f32.gmra.mrb[0].mxu0 %v43
    %v164 = vpop.f32.mrb[0].mxu0
    %v165 = vadd.f32 %v96, %v164
    %v166 = vpop.f32.mrb[0].mxu0
    %167 = vmatprep.mubr.f32.mxu0 0.0
    %168 = vmatmul.mubr.f32.gmra.mrb[0].mxu0 %v44
    %v169 = vpop.f32.mrb[0].mxu0
    %v170 = vadd.f32 %v96, %v169
    %v171 = vpop.f32.mrb[0].mxu0
    %172 = vmatprep.mubr.f32.mxu0 0.0
    %173 = vmatmul.mubr.f32.gmra.mrb[0].mxu0 %v45
    %v174 = vpop.f32.mrb[0].mxu0
    %v175 = vadd.f32 %v96, %v174
    %v176 = vpop.f32.mrb[0].mxu0
    %177 = vmatprep.mubr.f32.mxu0 0.0
    %178 = vmatmul.mubr.f32.gmra.mrb[0].mxu0 %v46
    %v179 = vpop.f32.mrb[0].mxu0
    %v180 = vadd.f32 %v96, %v179
    %v181 = vpop.f32.mrb[0].mxu0
    %182 = vmatprep.mubr.f32.mxu0 0.0
    %183 = vmatmul.mubr.f32.gmra.mrb[0].mxu0 %v47
    %v184 = vpop.f32.mrb[0].mxu0
    %v185 = vadd.f32 %v96, %v184
    %v186 = vpop.f32.mrb[0].mxu0
    %187 = vmatprep.mubr.f32.mxu0 0.0
    %188 = vmatmul.mubr.f32.gmra.mrb[0].mxu0 %v48
    %v189 = vpop.f32.mrb[0].mxu0
    %v190 = vadd.f32 %v96, %v189
    %v191 = vpop.f32.mrb[0].mxu0
    %192 = vmatprep.mubr.f32.mxu0 0.0
    %193 = vmatmul.mubr.f32.gmra.mrb[0].mxu0 %v49
    %v194 = vpop.f32.mrb[0].mxu0
    %v195 = vadd.f32 %v96, %v194
    %v196 = vpop.f32.mrb[0].mxu0
    %197 = vmatprep.mubr.f32.mxu0 0.0
    %198 = vmatmul.mubr.f32.gmra.mrb[0].mxu0 %v50
    %v199 = vpop.f32.mrb[0].mxu0
    %v200 = vadd.f32 %v96, %v199
    %v201 = vpop.f32.mrb[0].mxu0
    %202 = vmatprep.mubr.f32.mxu0 0.0
    %203 = vmatmul.mubr.f32.gmra.mrb[0].mxu0 %v51
    %v204 = vpop.f32.mrb[0].mxu0
    %v205 = vadd.f32 %v96, %v204
    %v206 = vpop.f32.mrb[0].mxu0
    %207 = vmatprep.mubr.f32.mxu0 0.0
    %208 = vmatmul.mubr.f32.gmra.mrb[0].mxu0 %v52
    %v209 = vpop.f32.mrb[0].mxu0
    %v210 = vadd.f32 %v96, %v209
    %v211 = vpop.f32.mrb[0].mxu0
    %212 = vmatprep.mubr.f32.mxu0 0.0
    %213 = vmatmul.mubr.f32.gmra.mrb[0].mxu0 %v53
    %v214 = vpop.f32.mrb[0].mxu0
    %v215 = vadd.f32 %v96, %v214
    %v216 = vpop.f32.mrb[0].mxu0
    %217 = vmatprep.mubr.f32.mxu0 0.0
    %218 = vmatmul.mubr.f32.gmra.mrb[0].mxu0 %v54
    %v219 = vpop.f32.mrb[0].mxu0
    %v220 = vadd.f32 %v96, %v219
    %v221 = vpop.f32.mrb[0].mxu0
    %222 = vmatprep.mubr.f32.mxu0 0.0
    %223 = vmatmul.mubr.f32.gmra.mrb[0].mxu0 %v55
    %v224 = vpop.f32.mrb[0].mxu0
    %v225 = vadd.f32 %v96, %v224
    %v226 = vpop.f32.mrb[0].mxu0
    %227 = vmatprep.mubr.f32.mxu0 0.0
    %228 = vmatmul.mubr.f32.gmra.mrb[0].mxu0 %v56
    %v229 = vpop.f32.mrb[0].mxu0
    %v230 = vadd.f32 %v96, %v229
    %v231 = vpop.f32.mrb[0].mxu0
    %232 = vmatprep.mubr.f32.mxu0 0.0
    %233 = vmatmul.mubr.f32.gmra.mrb[0].mxu0 %v57
    %v234 = vpop.f32.mrb[0].mxu0
    %v235 = vadd.f32 %v96, %v234
    %v236 = vpop.f32.mrb[0].mxu0
    %237 = vmatprep.mubr.f32.mxu0 0.0
    %238 = vmatmul.mubr.f32.gmra.mrb[0].mxu0 %v58
    %v239 = vpop.f32.mrb[0].mxu0
    %v240 = vadd.f32 %v96, %v239
    %v241 = vpop.f32.mrb[0].mxu0
    %242 = vmatprep.mubr.f32.mxu0 0.0
    %243 = vmatmul.mubr.f32.gmra.mrb[0].mxu0 %v59
    %v244 = vpop.f32.mrb[0].mxu0
    %v245 = vadd.f32 %v96, %v244
    %v246 = vpop.f32.mrb[0].mxu0
    %247 = vmatprep.mubr.f32.mxu0 0.0
    %248 = vmatmul.mubr.f32.gmra.mrb[0].mxu0 %v60
    %v249 = vpop.f32.mrb[0].mxu0
    %v250 = vadd.f32 %v96, %v249
    %v251 = vpop.f32.mrb[0].mxu0
    %252 = vmatprep.mubr.f32.mxu0 0.0
    %253 = vmatmul.mubr.f32.gmra.mrb[0].mxu0 %v61
    %v254 = vpop.f32.mrb[0].mxu0
    %v255 = vadd.f32 %v96, %v254
    %v256 = vpop.f32.mrb[0].mxu0
    %257 = vmatprep.mubr.f32.mxu0 0.0
    %258 = vmatmul.mubr.f32.gmra.mrb[0].mxu0 %v62
    %v259 = vpop.f32.mrb[0].mxu0
    %v260 = vadd.f32 %v96, %v259
    %v261 = vpop.f32.mrb[0].mxu0
    %262 = vmatprep.mubr.f32.mxu0 0.0
    %263 = vmatmul.mubr.f32.gmra.mrb[0].mxu0 %v63
    %v264 = vpop.f32.mrb[0].mxu0
    %v265 = vadd.f32 %v96, %v264
    %v266 = vpop.f32.mrb[0].mxu0
    %267 = vmatprep.mubr.f32.mxu0 0.0
    %268 = vmatmul.mubr.f32.gmra.mrb[0].mxu0 %v64
    %v269 = vpop.f32.mrb[0].mxu0
    %v270 = vadd.f32 %v96, %v269
    %v271 = vpop.f32.mrb[0].mxu0
    %272 = vmatprep.mubr.f32.mxu0 0.0
    %273 = vmatmul.mubr.f32.gmra.mrb[0].mxu0 %v65
    %v274 = vpop.f32.mrb[0].mxu0
    %v275 = vadd.f32 %v96, %v274
    %v276 = vpop.f32.mrb[0].mxu0
    %277 = vmatprep.mubr.f32.mxu0 0.0
    %278 = vmatmul.mubr.f32.gmra.mrb[0].mxu0 %v66
    %v279 = vpop.f32.mrb[0].mxu0
    %v280 = vadd.f32 %v96, %v279
    %v281 = vpop.f32.mrb[0].mxu0
    %282 = vmatprep.mubr.f32.mxu0 0.0
    %283 = vmatmul.mubr.f32.gmra.mrb[0].mxu0 %v67
    %v284 = vpop.f32.mrb[0].mxu0
    %v285 = vadd.f32 %v96, %v284
    %v286 = vpop.f32.mrb[0].mxu0
    %287 = vmatprep.mubr.f32.mxu0 0.0
    %288 = vmatmul.mubr.f32.gmra.mrb[0].mxu0 %v68
    %v289 = vpop.f32.mrb[0].mxu0
    %v290 = vadd.f32 %v96, %v289
    %v291 = vpop.f32.mrb[0].mxu0
    %292 = vmatprep.mubr.f32.mxu0 0.0
    %293 = vmatmul.mubr.f32.gmra.mrb[0].mxu0 %v69
    %v294 = vpop.f32.mrb[0].mxu0
    %v295 = vadd.f32 %v96, %v294
    %v296 = vpop.f32.mrb[0].mxu0
    %297 = vmatprep.mubr.f32.mxu0 0.0
    %298 = vmatmul.mubr.f32.gmra.mrb[0].mxu0 %v70
    %v299 = vpop.f32.mrb[0].mxu0
    %v300 = vadd.f32 %v96, %v299
    %v301 = vpop.f32.mrb[0].mxu0
    %302 = vmatprep.mubr.f32.mxu0 0.0
    %303 = vmatmul.mubr.f32.gmra.mrb[0].mxu0 %v71
    %v304 = vpop.f32.mrb[0].mxu0
    %v305 = vadd.f32 %v96, %v304
    %v306 = vpop.f32.mrb[0].mxu0
    %307 = vmatprep.mubr.f32.mxu0 0.0
    %308 = vmatmul.mubr.f32.gmra.mrb[0].mxu0 %v72
    %v309 = vpop.f32.mrb[0].mxu0
    %v310 = vadd.f32 %v96, %v309
    %v311 = vpop.f32.mrb[0].mxu0
    %312 = vmatprep.mubr.f32.mxu0 0.0
    %313 = vmatmul.mubr.f32.gmra.mrb[0].mxu0 %v73
    %v314 = vpop.f32.mrb[0].mxu0
    %v315 = vadd.f32 %v96, %v314
    %v316 = vpop.f32.mrb[0].mxu0
    %317 = vmatprep.mubr.f32.mxu0 0.0
    %318 = vmatmul.mubr.f32.gmra.mrb[0].mxu0 %v74
    %v319 = vpop.f32.mrb[0].mxu0
    %v320 = vadd.f32 %v96, %v319
    %v321 = vpop.f32.mrb[0].mxu0
    %322 = vdwg.mxu0
    %323 = vmax.xlane.f32.xlu0 %v165
    %v324 = vpop.xlane.xlu0 %323
    %325 = vmax.xlane.f32.xlu0 %v170
    %v326 = vpop.xlane.xlu0 %325
    %327 = vmax.xlane.f32.xlu0 %v175
    %v328 = vpop.xlane.xlu0 %327
    %329 = vmax.xlane.f32.xlu0 %v180
    %v330 = vpop.xlane.xlu0 %329
    %331 = vmax.xlane.f32.xlu0 %v185
    %v332 = vpop.xlane.xlu0 %331
    %333 = vmax.xlane.f32.xlu0 %v190
    %v334 = vpop.xlane.xlu0 %333
    %335 = vmax.xlane.f32.xlu0 %v195
    %v336 = vpop.xlane.xlu0 %335
    %337 = vmax.xlane.f32.xlu0 %v200
    %v338 = vpop.xlane.xlu0 %337
    %339 = vmax.xlane.f32.xlu0 %v205
    %v340 = vpop.xlane.xlu0 %339
    %341 = vmax.xlane.f32.xlu0 %v210
    %v342 = vpop.xlane.xlu0 %341
    %343 = vmax.xlane.f32.xlu0 %v215
    %v344 = vpop.xlane.xlu0 %343
    %345 = vmax.xlane.f32.xlu0 %v220
    %v346 = vpop.xlane.xlu0 %345
    %347 = vmax.xlane.f32.xlu0 %v225
    %v348 = vpop.xlane.xlu0 %347
    %349 = vmax.xlane.f32.xlu0 %v230
    %v350 = vpop.xlane.xlu0 %349
    %351 = vmax.xlane.f32.xlu0 %v235
    %v352 = vpop.xlane.xlu0 %351
    %353 = vmax.xlane.f32.xlu0 %v240
    %v354 = vpop.xlane.xlu0 %353
    %355 = vmax.xlane.f32.xlu0 %v245
    %v356 = vpop.xlane.xlu0 %355
    %357 = vmax.xlane.f32.xlu0 %v250
    %v358 = vpop.xlane.xlu0 %357
    %359 = vmax.xlane.f32.xlu0 %v255
    %v360 = vpop.xlane.xlu0 %359
    %361 = vmax.xlane.f32.xlu0 %v260
    %v362 = vpop.xlane.xlu0 %361
    %363 = vmax.xlane.f32.xlu0 %v265
    %v364 = vpop.xlane.xlu0 %363
    %365 = vmax.xlane.f32.xlu0 %v270
    %v366 = vpop.xlane.xlu0 %365
    %367 = vmax.xlane.f32.xlu0 %v275
    %v368 = vpop.xlane.xlu0 %367
    %369 = vmax.xlane.f32.xlu0 %v280
    %v370 = vpop.xlane.xlu0 %369
    %371 = vmax.xlane.f32.xlu0 %v285
    %v372 = vpop.xlane.xlu0 %371
    %373 = vmax.xlane.f32.xlu0 %v290
    %v374 = vpop.xlane.xlu0 %373
    %375 = vmax.xlane.f32.xlu0 %v295
    %v376 = vpop.xlane.xlu0 %375
    %377 = vmax.xlane.f32.xlu0 %v300
    %v378 = vpop.xlane.xlu0 %377
    %379 = vmax.xlane.f32.xlu0 %v305
    %v380 = vpop.xlane.xlu0 %379
    %381 = vmax.xlane.f32.xlu0 %v310
    %v382 = vpop.xlane.xlu0 %381
    %383 = vmax.xlane.f32.xlu0 %v315
    %v384 = vpop.xlane.xlu0 %383
    %385 = vmax.xlane.f32.xlu0 %v320
    %v386 = vpop.xlane.xlu0 %385
    %v387 = vsub.f32 %v165, %v324
    %v388 = vsub.f32 %v170, %v326
    %v389 = vsub.f32 %v175, %v328
    %v390 = vsub.f32 %v180, %v330
    %v391 = vsub.f32 %v185, %v332
    %v392 = vsub.f32 %v190, %v334
    %v393 = vsub.f32 %v195, %v336
    %v394 = vsub.f32 %v200, %v338
    %v395 = vsub.f32 %v205, %v340
    %v396 = vsub.f32 %v210, %v342
    %v397 = vsub.f32 %v215, %v344
    %v398 = vsub.f32 %v220, %v346
    %v399 = vsub.f32 %v225, %v348
    %v400 = vsub.f32 %v230, %v350
    %v401 = vsub.f32 %v235, %v352
    %v402 = vsub.f32 %v240, %v354
    %v403 = vsub.f32 %v245, %v356
    %v404 = vsub.f32 %v250, %v358
    %v405 = vsub.f32 %v255, %v360
    %v406 = vsub.f32 %v260, %v362
    %v407 = vsub.f32 %v265, %v364
    %v408 = vsub.f32 %v270, %v366
    %v409 = vsub.f32 %v275, %v368
    %v410 = vsub.f32 %v280, %v370
    %v411 = vsub.f32 %v285, %v372
    %v412 = vsub.f32 %v290, %v374
    %v413 = vsub.f32 %v295, %v376
    %v414 = vsub.f32 %v300, %v378
    %v415 = vsub.f32 %v305, %v380
    %v416 = vsub.f32 %v310, %v382
    %v417 = vsub.f32 %v315, %v384
    %v418 = vsub.f32 %v320, %v386
    %v419 = vmul.f32 %v387, 1.442695
    %v420 = vpow.pop %v419
    %v421 = vmul.f32 %v388, 1.442695
    %v422 = vpow.pop %v421
    %v423 = vmul.f32 %v389, 1.442695
    %v424 = vpow.pop %v423
    %v425 = vmul.f32 %v390, 1.442695
    %v426 = vpow.pop %v425
    %v427 = vmul.f32 %v391, 1.442695
    %v428 = vpow.pop %v427
    %v429 = vmul.f32 %v392, 1.442695
    %v430 = vpow.pop %v429
    %v431 = vmul.f32 %v393, 1.442695
    %v432 = vpow.pop %v431
    %v433 = vmul.f32 %v394, 1.442695
    %v434 = vpow.pop %v433
    %v435 = vmul.f32 %v395, 1.442695
    %v436 = vpow.pop %v435
    %v437 = vmul.f32 %v396, 1.442695
    %v438 = vpow.pop %v437
    %v439 = vmul.f32 %v397, 1.442695
    %v440 = vpow.pop %v439
    %v441 = vmul.f32 %v398, 1.442695
    %v442 = vpow.pop %v441
    %v443 = vmul.f32 %v399, 1.442695
    %v444 = vpow.pop %v443
    %v445 = vmul.f32 %v400, 1.442695
    %v446 = vpow.pop %v445
    %v447 = vmul.f32 %v401, 1.442695
    %v448 = vpow.pop %v447
    %v449 = vmul.f32 %v402, 1.442695
    %v450 = vpow.pop %v449
    %v451 = vmul.f32 %v403, 1.442695
    %v452 = vpow.pop %v451
    %v453 = vmul.f32 %v404, 1.442695
    %v454 = vpow.pop %v453
    %v455 = vmul.f32 %v405, 1.442695
    %v456 = vpow.pop %v455
    %v457 = vmul.f32 %v406, 1.442695
    %v458 = vpow.pop %v457
    %v459 = vmul.f32 %v407, 1.442695
    %v460 = vpow.pop %v459
    %v461 = vmul.f32 %v408, 1.442695
    %v462 = vpow.pop %v461
    %v463 = vmul.f32 %v409, 1.442695
    %v464 = vpow.pop %v463
    %v465 = vmul.f32 %v410, 1.442695
    %v466 = vpow.pop %v465
    %v467 = vmul.f32 %v411, 1.442695
    %v468 = vpow.pop %v467
    %v469 = vmul.f32 %v412, 1.442695
    %v470 = vpow.pop %v469
    %v471 = vmul.f32 %v413, 1.442695
    %v472 = vpow.pop %v471
    %v473 = vmul.f32 %v414, 1.442695
    %v474 = vpow.pop %v473
    %v475 = vmul.f32 %v415, 1.442695
    %v476 = vpow.pop %v475
    %v477 = vmul.f32 %v416, 1.442695
    %v478 = vpow.pop %v477
    %v479 = vmul.f32 %v417, 1.442695
    %v480 = vpow.pop %v479
    %v481 = vmul.f32 %v418, 1.442695
    %v482 = vpow.pop %v481
    %483 = vadd.xlane.f32.xlu0 %v420
    %v484 = vpop.xlane.xlu0 %483
    %485 = vadd.xlane.f32.xlu0 %v422
    %v486 = vpop.xlane.xlu0 %485
    %487 = vadd.xlane.f32.xlu0 %v424
    %v488 = vpop.xlane.xlu0 %487
    %489 = vadd.xlane.f32.xlu0 %v426
    %v490 = vpop.xlane.xlu0 %489
    %491 = vadd.xlane.f32.xlu0 %v428
    %v492 = vpop.xlane.xlu0 %491
    %493 = vadd.xlane.f32.xlu0 %v430
    %v494 = vpop.xlane.xlu0 %493
    %495 = vadd.xlane.f32.xlu0 %v432
    %v496 = vpop.xlane.xlu0 %495
    %497 = vadd.xlane.f32.xlu0 %v434
    %v498 = vpop.xlane.xlu0 %497
    %499 = vadd.xlane.f32.xlu0 %v436
    %v500 = vpop.xlane.xlu0 %499
    %501 = vadd.xlane.f32.xlu0 %v438
    %v502 = vpop.xlane.xlu0 %501
    %503 = vadd.xlane.f32.xlu0 %v440
    %v504 = vpop.xlane.xlu0 %503
    %505 = vadd.xlane.f32.xlu0 %v442
    %v506 = vpop.xlane.xlu0 %505
    %507 = vadd.xlane.f32.xlu0 %v444
    %v508 = vpop.xlane.xlu0 %507
    %509 = vadd.xlane.f32.xlu0 %v446
    %v510 = vpop.xlane.xlu0 %509
    %511 = vadd.xlane.f32.xlu0 %v448
    %v512 = vpop.xlane.xlu0 %511
    %513 = vadd.xlane.f32.xlu0 %v450
    %v514 = vpop.xlane.xlu0 %513
    %515 = vadd.xlane.f32.xlu0 %v452
    %v516 = vpop.xlane.xlu0 %515
    %517 = vadd.xlane.f32.xlu0 %v454
    %v518 = vpop.xlane.xlu0 %517
    %519 = vadd.xlane.f32.xlu0 %v456
    %v520 = vpop.xlane.xlu0 %519
    %521 = vadd.xlane.f32.xlu0 %v458
    %v522 = vpop.xlane.xlu0 %521
    %523 = vadd.xlane.f32.xlu0 %v460
    %v524 = vpop.xlane.xlu0 %523
    %525 = vadd.xlane.f32.xlu0 %v462
    %v526 = vpop.xlane.xlu0 %525
    %527 = vadd.xlane.f32.xlu0 %v464
    %v528 = vpop.xlane.xlu0 %527
    %529 = vadd.xlane.f32.xlu0 %v466
    %v530 = vpop.xlane.xlu0 %529
    %531 = vadd.xlane.f32.xlu0 %v468
    %v532 = vpop.xlane.xlu0 %531
    %533 = vadd.xlane.f32.xlu0 %v470
    %v534 = vpop.xlane.xlu0 %533
    %535 = vadd.xlane.f32.xlu0 %v472
    %v536 = vpop.xlane.xlu0 %535
    %537 = vadd.xlane.f32.xlu0 %v474
    %v538 = vpop.xlane.xlu0 %537
    %539 = vadd.xlane.f32.xlu0 %v476
    %v540 = vpop.xlane.xlu0 %539
    %541 = vadd.xlane.f32.xlu0 %v478
    %v542 = vpop.xlane.xlu0 %541
    %543 = vadd.xlane.f32.xlu0 %v480
    %v544 = vpop.xlane.xlu0 %543
    %545 = vadd.xlane.f32.xlu0 %v482
    %v546 = vpop.xlane.xlu0 %545
    %v547 = vrcp.pop %v484
    %v548 = vmul.f32 %v420, %v547
    %v549 = vrcp.pop %v486
    %v550 = vmul.f32 %v422, %v549
    %v551 = vrcp.pop %v488
    %v552 = vmul.f32 %v424, %v551
    %v553 = vrcp.pop %v490
    %v554 = vmul.f32 %v426, %v553
    %v555 = vrcp.pop %v492
    %v556 = vmul.f32 %v428, %v555
    %v557 = vrcp.pop %v494
    %v558 = vmul.f32 %v430, %v557
    %v559 = vrcp.pop %v496
    %v560 = vmul.f32 %v432, %v559
    %v561 = vrcp.pop %v498
    %v562 = vmul.f32 %v434, %v561
    %v563 = vrcp.pop %v500
    %v564 = vmul.f32 %v436, %v563
    %v565 = vrcp.pop %v502
    %v566 = vmul.f32 %v438, %v565
    %v567 = vrcp.pop %v504
    %v568 = vmul.f32 %v440, %v567
    %v569 = vrcp.pop %v506
    %v570 = vmul.f32 %v442, %v569
    %v571 = vrcp.pop %v508
    %v572 = vmul.f32 %v444, %v571
    %v573 = vrcp.pop %v510
    %v574 = vmul.f32 %v446, %v573
    %v575 = vrcp.pop %v512
    %v576 = vmul.f32 %v448, %v575
    %v577 = vrcp.pop %v514
    %v578 = vmul.f32 %v450, %v577
    %v579 = vrcp.pop %v516
    %v580 = vmul.f32 %v452, %v579
    %v581 = vrcp.pop %v518
    %v582 = vmul.f32 %v454, %v581
    %v583 = vrcp.pop %v520
    %v584 = vmul.f32 %v456, %v583
    %v585 = vrcp.pop %v522
    %v586 = vmul.f32 %v458, %v585
    %v587 = vrcp.pop %v524
    %v588 = vmul.f32 %v460, %v587
    %v589 = vrcp.pop %v526
    %v590 = vmul.f32 %v462, %v589
    %v591 = vrcp.pop %v528
    %v592 = vmul.f32 %v464, %v591
    %v593 = vrcp.pop %v530
    %v594 = vmul.f32 %v466, %v593
    %v595 = vrcp.pop %v532
    %v596 = vmul.f32 %v468, %v595
    %v597 = vrcp.pop %v534
    %v598 = vmul.f32 %v470, %v597
    %v599 = vrcp.pop %v536
    %v600 = vmul.f32 %v472, %v599
    %v601 = vrcp.pop %v538
    %v602 = vmul.f32 %v474, %v601
    %v603 = vrcp.pop %v540
    %v604 = vmul.f32 %v476, %v603
    %v605 = vrcp.pop %v542
    %v606 = vmul.f32 %v478, %v605
    %v607 = vrcp.pop %v544
    %v608 = vmul.f32 %v480, %v607
    %v609 = vrcp.pop %v546
    %v610 = vmul.f32 %v482, %v609
    %611 = vst [vmem:[#allocation7] sm:$0xff] %v548
    %612 = vst [vmem:[#allocation7 + $0x8] sm:$0xff] %v550
    %613 = vst [vmem:[#allocation7 + $0x10] sm:$0xff] %v552
    %614 = vst [vmem:[#allocation7 + $0x18] sm:$0xff] %v554
    %615 = vst [vmem:[#allocation7 + $0x20] sm:$0xff] %v556
    %616 = vst [vmem:[#allocation7 + $0x28] sm:$0xff] %v558
    %617 = vst [vmem:[#allocation7 + $0x30] sm:$0xff] %v560
    %618 = vst [vmem:[#allocation7 + $0x38] sm:$0xff] %v562
    %619 = vst [vmem:[#allocation7 + $0x40] sm:$0xff] %v564
    %620 = vst [vmem:[#allocation7 + $0x48] sm:$0xff] %v566
    %621 = vst [vmem:[#allocation7 + $0x50] sm:$0xff] %v568
    %622 = vst [vmem:[#allocation7 + $0x58] sm:$0xff] %v570
    %623 = vst [vmem:[#allocation7 + $0x60] sm:$0xff] %v572
    %624 = vst [vmem:[#allocation7 + $0x68] sm:$0xff] %v574
    %625 = vst [vmem:[#allocation7 + $0x70] sm:$0xff] %v576
    %626 = vst [vmem:[#allocation7 + $0x78] sm:$0xff] %v578
    %627 = vst [vmem:[#allocation7 + $0x80] sm:$0xff] %v580
    %628 = vst [vmem:[#allocation7 + $0x88] sm:$0xff] %v582
    %629 = vst [vmem:[#allocation7 + $0x90] sm:$0xff] %v584
    %630 = vst [vmem:[#allocation7 + $0x98] sm:$0xff] %v586
    %631 = vst [vmem:[#allocation7 + $0xa0] sm:$0xff] %v588
    %632 = vst [vmem:[#allocation7 + $0xa8] sm:$0xff] %v590
    %633 = vst [vmem:[#allocation7 + $0xb0] sm:$0xff] %v592
    %634 = vst [vmem:[#allocation7 + $0xb8] sm:$0xff] %v594
    %635 = vst [vmem:[#allocation7 + $0xc0] sm:$0xff] %v596
    %636 = vst [vmem:[#allocation7 + $0xc8] sm:$0xff] %v598
    %637 = vst [vmem:[#allocation7 + $0xd0] sm:$0xff] %v600
    %638 = vst [vmem:[#allocation7 + $0xd8] sm:$0xff] %v602
    %639 = vst [vmem:[#allocation7 + $0xe0] sm:$0xff] %v604
    %640 = vst [vmem:[#allocation7 + $0xe8] sm:$0xff] %v606
    %641 = vst [vmem:[#allocation7 + $0xf0] sm:$0xff] %v608
    %642 = vst [vmem:[#allocation7 + $0xf8] sm:$0xff] %v610
    // Predicated region
    $region22: #{tpu_custom_call.1} parent=1 // pred_check
      _
    $region23: #{tpu_custom_call.1} parent=1 // pred_check_branch
      %644 = sbr.rel (0) target = $region25
    $region24: #{tpu_custom_call.1} parent=1 // pred_region
      %s646 = ssub.s32 4096, 4096
      %647 = vsyncadd [#allocation4], %s646
      %s648 = sshll.u32 [#allocation7], 4
      %s649 = int_to_ptr.vmem [resolvable:$true] %s648
      %654 = dma.vmem_to_hbm [thread:$0]  %s649, 4096, %s3, [#allocation4], 128, 128, 8
    $region25: #{tpu_custom_call.1} parent=1 // pred_fallthru
      _
    // Predicated region
    $region26: #{tpu_custom_call.1} parent=1 // pred_check
      _
    $region27: #{tpu_custom_call.1} parent=1 // pred_check_branch
      %656 = sbr.rel (0) target = $region29
    $region28: #{tpu_custom_call.1} parent=1 // pred_region
      %657 = dma.done [#allocation4], 4096
    $region29: #{tpu_custom_call.1} parent=1 // pred_fallthru
      _
    %658 = vsyncpa [#allocation3], 1
    %659 = vsyncpa [#allocation6], 1
    %660 = vsyncpa [#allocation4], 1

</llo_original>
